<compile_context>
chip_gen: v6e
topology: v6e:2x2x1
jax: 0.10.0
libtpu: 0.0.40
codegen_flags: <defaults>
</compile_context>

<pallas_src>
import functools

import jax
import jax.numpy as jnp
from jax.experimental import pallas as pl
from jax.experimental.pallas import tpu as pltpu

# ------------------------- synthetic hyperparameters -------------------------
TEXT_NUM_EMBEDDINGS = 64      # hp.text_num_embeddings (V)
ENCODER_EMBEDDING_SIZE = 32   # hp.encoder_embedding_size (E)
EMBEDDING_SIZE = 32           # hp.embedding_size (E_out)
ENCODER_KERNEL_SIZE = 3       # hp.encoder_kernel_size (K)
NUM_CONV_LAYERS = 3
BN_EPS = 1e-5

BATCH = 2
SEQ_LEN = 16                  # T


# --------------------------------- kernel ------------------------------------
def encoder_prenet_kernel(ids_ref, embw1_ref, convw_ref, vec_ref, w2_ref,
                          out_ref, *, num_layers, ksize, seq_len, e_size, e_out):
    """Single grid step over the whole (B*T, ...) slab.

    ids_ref   : (N, 1)        int32 token ids, N = B*T (fixed-length sequences)
    embw1_ref : (V, E)        bf16, embedding @ W1^T (linear_1 folded in)
    convw_ref : (L*K, E, E)   bf16, per-layer per-tap conv weights (Ci, Co)
    vec_ref   : (2+2L, E)     f32 packed vectors:
                              row 0 = b1, row 1 = b2,
                              rows 2..2+L-1   = folded BN scale (per layer),
                              rows 2+L..2+2L-1 = folded BN shift (conv bias folded)
    w2_ref    : (E, E_out)    bf16 linear_2 weight (in, out)
    out_ref   : (N, E_out)    f32
    """
    N = ids_ref.shape[0]
    V = embw1_ref.shape[0]
    pad = (ksize - 1) // 2

    # Embedding lookup fused with linear_1: one-hot (exact in bf16) matmul.
    ids = ids_ref[...]                                              # (N, 1) int32
    vocab_iota = jax.lax.broadcasted_iota(jnp.int32, (N, V), 1)
    onehot = (vocab_iota == ids).astype(jnp.bfloat16)               # (N, V)
    h = jnp.dot(onehot, embw1_ref[...], preferred_element_type=jnp.float32)
    h = h + vec_ref[0:1, :e_size]                                   # + b1, f32

    # Halo masks (rows whose conv taps fall outside their own sequence).
    # Built ONCE here and reused by every layer.  Valid for equal-length
    # sequences packed (b, t) row-major.
    t_idx = jax.lax.broadcasted_iota(jnp.int32, (N, 1), 0) % seq_len
    masks = {}
    for k in range(ksize):
        s = pad - k                      # tap k reads h[t - s]
        if s > 0:
            masks[s] = t_idx < s
        elif s < 0:
            masks[s] = t_idx >= seq_len + s

    # L x (conv1d same-pad -> BN(inference) -> ReLU).  Each layer is K
    # accumulating (N,E)x(E,E) MXU dots (no im2col concat / relayout).
    for layer in range(num_layers):
        acc = jnp.dot(h.astype(jnp.bfloat16), convw_ref[layer * ksize + pad],
                      preferred_element_type=jnp.float32)           # center tap
        for k in range(ksize):
            s = pad - k
            if s == 0:
                continue
            shifted = pltpu.roll(h, shift=s % N, axis=0)            # h[t - s]
            shifted = jnp.where(masks[s], 0.0, shifted)             # zero halo rows
            acc = acc + jnp.dot(shifted.astype(jnp.bfloat16),
                                convw_ref[layer * ksize + k],
                                preferred_element_type=jnp.float32)
        scale = vec_ref[2 + layer:3 + layer, :e_size]
        shift = vec_ref[2 + num_layers + layer:3 + num_layers + layer, :e_size]
        h = jnp.maximum(acc * scale + shift, 0.0)                   # f32 elementwise

    # linear_2, one contiguous (B*T, E_out) store.
    o = jnp.dot(h.astype(jnp.bfloat16), w2_ref[...],
                preferred_element_type=jnp.float32)
    o = o + vec_ref[1:2, :e_out]
    out_ref[...] = o.astype(out_ref.dtype)


# -------------------------------- wrapper -------------------------------------
def encoder_prenet(text, params):
    B, T = text.shape
    N = B * T
    E = ENCODER_EMBEDDING_SIZE
    E_out = params["w2_t"].shape[1]
    K = ENCODER_KERNEL_SIZE
    L = NUM_CONV_LAYERS

    ids = text.reshape(N, 1).astype(jnp.int32)

    kernel = functools.partial(encoder_prenet_kernel,
                               num_layers=L, ksize=K, seq_len=T,
                               e_size=E, e_out=E_out)

    # Single grid step: whole working set (~40 KB) is VMEM-resident on every
    # TPU generation.  Explicit full-array VMEM specs for every operand.
    vmem = lambda: pl.BlockSpec(memory_space=pltpu.MemorySpace.VMEM)
    out = pl.pallas_call(
        kernel,
        out_shape=jax.ShapeDtypeStruct((N, E_out), jnp.float32),
        in_specs=[vmem() for _ in range(5)],
        out_specs=vmem(),
    )(ids, params["embw1"], params["conv_w"], params["vec"], params["w2_t"])
    return out.reshape(B, T, E_out)


# ------------------------- deterministic parameter init -----------------------
def init_params(key):
    E, E_out, K, L = ENCODER_EMBEDDING_SIZE, EMBEDDING_SIZE, ENCODER_KERNEL_SIZE, NUM_CONV_LAYERS
    V = TEXT_NUM_EMBEDDINGS
    ks = iter(jax.random.split(key, 5 + 6 * L))
    p = {}

    embedding = jax.random.normal(next(ks), (V, E), jnp.float32)

    # linear_1 / linear_2 (PyTorch stores (out,in); pre-transposed to (in,out))
    lim1 = 1.0 / jnp.sqrt(E)
    w1_t = jax.random.uniform(next(ks), (E, E), jnp.float32, -lim1, lim1)
    b1 = jax.random.uniform(next(ks), (E,), jnp.float32, -lim1, lim1)
    w2_t = jax.random.uniform(next(ks), (E, E_out), jnp.float32, -lim1, lim1)
    b2 = jax.random.uniform(next(ks), (E_out,), jnp.float32, -lim1, lim1)

    # Fold embedding @ W1^T; store MXU-side weights in bf16 (halves DMA bytes).
    p["embw1"] = (embedding @ w1_t).astype(jnp.bfloat16)            # (V, E)
    p["w2_t"] = w2_t.astype(jnp.bfloat16)                           # (E, E_out)

    # conv stacks: PyTorch weight (Co, Ci, K) -> per-tap (Ci, Co) slices,
    # stacked as (L*K, E, E), bf16.
    limc = 1.0 / jnp.sqrt(E * K)
    conv_w, scales, shifts = [], [], []
    for _ in range(L):
        w = jax.random.uniform(next(ks), (E, E, K), jnp.float32, -limc, limc)
        b = jax.random.uniform(next(ks), (E,), jnp.float32, -limc, limc)
        gamma = 1.0 + 0.1 * jax.random.normal(next(ks), (E,), jnp.float32)
        beta = 0.1 * jax.random.normal(next(ks), (E,), jnp.float32)
        mean = 0.05 * jax.random.normal(next(ks), (E,), jnp.float32)
        var = 1.0 + 0.1 * jnp.abs(jax.random.normal(next(ks), (E,), jnp.float32))
        scale = gamma / jnp.sqrt(var + BN_EPS)                      # (E,)
        shift = beta + scale * (b - mean)                           # conv bias folded in
        for k in range(K):
            conv_w.append(jnp.transpose(w[:, :, k]))                # (Ci, Co)
        scales.append(scale)
        shifts.append(shift)
    p["conv_w"] = jnp.stack(conv_w, axis=0).astype(jnp.bfloat16)    # (L*K, E, E)

    # Pack all small vectors into one (2+2L, E) f32 slab (one DMA descriptor).
    Emax = max(E, E_out)
    rows = [jnp.pad(b1, (0, Emax - E)), jnp.pad(b2, (0, Emax - E_out))]
    rows += [jnp.pad(s, (0, Emax - E)) for s in scales]
    rows += [jnp.pad(s, (0, Emax - E)) for s in shifts]
    p["vec"] = jnp.stack(rows, axis=0).astype(jnp.float32)          # (2+2L, Emax)
    return p


# ------------------------------ pure-JAX reference ----------------------------
def reference(text, p):
    """Same forward math in plain JAX (f32 activations, bf16-quantized weights
    upcast to f32 — matches what the kernel consumes)."""
    E, E_out = ENCODER_EMBEDDING_SIZE, EMBEDDING_SIZE
    K, pad, L = ENCODER_KERNEL_SIZE, (ENCODER_KERNEL_SIZE - 1) // 2, NUM_CONV_LAYERS
    embw1 = p["embw1"].astype(jnp.float32)
    x = embw1[text] + p["vec"][0, :E]                               # (B, T, E)
    B, T, _ = x.shape
    conv_w = p["conv_w"].astype(jnp.float32)
    for l in range(L):
        xp = jnp.pad(x, ((0, 0), (pad, pad), (0, 0)))
        y = jnp.zeros_like(x)
        for k in range(K):
            y = y + xp[:, k:k + T, :] @ conv_w[l * K + k]
        x = jax.nn.relu(y * p["vec"][2 + l, :E] + p["vec"][2 + L + l, :E])
    return x @ p["w2_t"].astype(jnp.float32) + p["vec"][1, :E_out]


# ---------------------------------- main --------------------------------------
if __name__ == "__main__":
    key = jax.random.PRNGKey(0)
    kp, kt = jax.random.split(key)
    params = init_params(kp)
    text = jax.random.randint(kt, (BATCH, SEQ_LEN), 0, TEXT_NUM_EMBEDDINGS, jnp.int32)
    # nn.Embedding would raise on out-of-range ids; the one-hot gather would
    # silently produce zeros, so guard here.
    assert int(jnp.max(text)) < TEXT_NUM_EMBEDDINGS and int(jnp.min(text)) >= 0

    out = encoder_prenet(text, params)
    out = jax.block_until_ready(out)

    ref = reference(text, params)
    assert out.shape == (BATCH, SEQ_LEN, EMBEDDING_SIZE), out.shape
    err = float(jnp.max(jnp.abs(out - ref)))
    # bf16 activation casts at the MXU inputs -> tolerance loosened vs. pure-f32.
    assert jnp.allclose(out, ref, atol=2e-2, rtol=2e-2), err
    print("KERNEL_OK")
</pallas_src>

<mosaic_0001>
module attributes {stable_mosaic.version = 11 : i64} {
  func.func @encoder_prenet_kernel(%arg0: memref<32x1xi32, #tpu.memory_space<vmem>>, %arg1: memref<64x32xbf16, #tpu.memory_space<vmem>>, %arg2: memref<9x32x32xbf16, #tpu.memory_space<vmem>>, %arg3: memref<8x32xf32, #tpu.memory_space<vmem>>, %arg4: memref<32x32xbf16, #tpu.memory_space<vmem>>, %arg5: memref<32x32xf32, #tpu.memory_space<vmem>>) attributes {dimension_semantics = [], scalar_prefetch = 0 : i64, scratch_operands = 0 : i64, tpu.core_type = #tpu.core_type<tc>} {
    %c0 = arith.constant 0 : index
    %c0_0 = arith.constant 0 : index
    %0 = vector.load %arg0[%c0, %c0_0] : memref<32x1xi32, #tpu.memory_space<vmem>>, vector<32x1xi32>
    %1 = tpu.iota {dimensions = array<i32: 1>} : vector<32x64xi32>
    %2 = vector.broadcast %0 : vector<32x1xi32> to vector<32x64xi32>
    %3 = arith.cmpi eq, %1, %2 : vector<32x64xi32>
    %4 = arith.extui %3 : vector<32x64xi1> to vector<32x64xi32>
    %5 = arith.sitofp %4 : vector<32x64xi32> to vector<32x64xf32>
    %6 = arith.truncf %5 : vector<32x64xf32> to vector<32x64xbf16>
    %c0_1 = arith.constant 0 : index
    %c0_2 = arith.constant 0 : index
    %7 = vector.load %arg1[%c0_1, %c0_2] : memref<64x32xbf16, #tpu.memory_space<vmem>>, vector<64x32xbf16>
    %cst = arith.constant dense<0.000000e+00> : vector<32x32xf32>
    %8 = tpu.matmul %6, %7, %cst {dimension_numbers = #tpu.dot_dimension_numbers<[1], [0], [0], [1], [0, 0, 1, 1], [], []>} : vector<32x64xbf16>, vector<64x32xbf16>, vector<32x32xf32> -> vector<32x32xf32>
    %c0_3 = arith.constant 0 : index
    %c0_4 = arith.constant 0 : index
    %9 = vector.load %arg3[%c0_3, %c0_4] : memref<8x32xf32, #tpu.memory_space<vmem>>, vector<1x32xf32>
    %10 = vector.broadcast %9 : vector<1x32xf32> to vector<32x32xf32>
    %11 = arith.addf %8, %10 : vector<32x32xf32>
    %12 = tpu.iota {dimensions = array<i32: 0>} : vector<32x1xi32>
    %c16_i32 = arith.constant 16 : i32
    %c0_i32 = arith.constant 0 : i32
    %13 = arith.cmpi eq, %c16_i32, %c0_i32 : i32
    %c1_i32 = arith.constant 1 : i32
    %14 = arith.select %13, %c1_i32, %c16_i32 : i32
    %15 = vector.broadcast %14 : i32 to vector<32x1xi32>
    %16 = arith.remsi %12, %15 : vector<32x1xi32>
    %c0_i32_5 = arith.constant 0 : i32
    %17 = vector.broadcast %c0_i32_5 : i32 to vector<32x1xi32>
    %18 = arith.cmpi ne, %16, %17 : vector<32x1xi32>
    %c0_i32_6 = arith.constant 0 : i32
    %19 = vector.broadcast %c0_i32_6 : i32 to vector<32x1xi32>
    %20 = arith.cmpi slt, %16, %19 : vector<32x1xi32>
    %c0_i32_7 = arith.constant 0 : i32
    %21 = arith.cmpi slt, %14, %c0_i32_7 : i32
    %22 = vector.broadcast %21 : i1 to vector<32x1xi1>
    %23 = vector.broadcast %22 : vector<32x1xi1> to vector<32x1xi1>
    %24 = arith.xori %20, %23 : vector<32x1xi1>
    %25 = arith.andi %24, %18 : vector<32x1xi1>
    %26 = vector.broadcast %14 : i32 to vector<32x1xi32>
    %27 = arith.addi %16, %26 : vector<32x1xi32>
    %28 = arith.select %25, %27, %16 : vector<32x1xi1>, vector<32x1xi32>
    %c1_i32_8 = arith.constant 1 : i32
    %29 = vector.broadcast %c1_i32_8 : i32 to vector<32x1xi32>
    %30 = arith.cmpi slt, %28, %29 : vector<32x1xi32>
    %c15_i32 = arith.constant 15 : i32
    %31 = vector.broadcast %c15_i32 : i32 to vector<32x1xi32>
    %32 = arith.cmpi sge, %28, %31 : vector<32x1xi32>
    %33 = arith.truncf %11 : vector<32x32xf32> to vector<32x32xbf16>
    %c1 = arith.constant 1 : index
    %c0_9 = arith.constant 0 : index
    %c0_10 = arith.constant 0 : index
    %34 = vector.load %arg2[%c1, %c0_9, %c0_10] : memref<9x32x32xbf16, #tpu.memory_space<vmem>>, vector<1x32x32xbf16>
    %35 = vector.shape_cast %34 : vector<1x32x32xbf16> to vector<32x32xbf16>
    %cst_11 = arith.constant dense<0.000000e+00> : vector<32x32xf32>
    %36 = tpu.matmul %33, %35, %cst_11 {dimension_numbers = #tpu.dot_dimension_numbers<[1], [0], [0], [1], [0, 0, 1, 1], [], []>} : vector<32x32xbf16>, vector<32x32xbf16>, vector<32x32xf32> -> vector<32x32xf32>
    %c1_i32_12 = arith.constant 1 : i32
    %37 = tpu.dynamic_rotate %11 by %c1_i32_12 dim 0 : vector<32x32xf32>, i32 -> vector<32x32xf32>
    %cst_13 = arith.constant 0.000000e+00 : f32
    %38 = vector.shape_cast %30 : vector<32x1xi1> to vector<32x1xi1>
    %39 = vector.broadcast %38 : vector<32x1xi1> to vector<32x32xi1>
    %40 = vector.broadcast %cst_13 : f32 to vector<32x32xf32>
    %41 = arith.select %39, %40, %37 : vector<32x32xi1>, vector<32x32xf32>
    %42 = arith.truncf %41 : vector<32x32xf32> to vector<32x32xbf16>
    %c0_14 = arith.constant 0 : index
    %c0_15 = arith.constant 0 : index
    %c0_16 = arith.constant 0 : index
    %43 = vector.load %arg2[%c0_14, %c0_15, %c0_16] : memref<9x32x32xbf16, #tpu.memory_space<vmem>>, vector<1x32x32xbf16>
    %44 = vector.shape_cast %43 : vector<1x32x32xbf16> to vector<32x32xbf16>
    %cst_17 = arith.constant dense<0.000000e+00> : vector<32x32xf32>
    %45 = tpu.matmul %42, %44, %cst_17 {dimension_numbers = #tpu.dot_dimension_numbers<[1], [0], [0], [1], [0, 0, 1, 1], [], []>} : vector<32x32xbf16>, vector<32x32xbf16>, vector<32x32xf32> -> vector<32x32xf32>
    %46 = arith.addf %36, %45 : vector<32x32xf32>
    %c31_i32 = arith.constant 31 : i32
    %47 = tpu.dynamic_rotate %11 by %c31_i32 dim 0 : vector<32x32xf32>, i32 -> vector<32x32xf32>
    %cst_18 = arith.constant 0.000000e+00 : f32
    %48 = vector.shape_cast %32 : vector<32x1xi1> to vector<32x1xi1>
    %49 = vector.broadcast %48 : vector<32x1xi1> to vector<32x32xi1>
    %50 = vector.broadcast %cst_18 : f32 to vector<32x32xf32>
    %51 = arith.select %49, %50, %47 : vector<32x32xi1>, vector<32x32xf32>
    %52 = arith.truncf %51 : vector<32x32xf32> to vector<32x32xbf16>
    %c2 = arith.constant 2 : index
    %c0_19 = arith.constant 0 : index
    %c0_20 = arith.constant 0 : index
    %53 = vector.load %arg2[%c2, %c0_19, %c0_20] : memref<9x32x32xbf16, #tpu.memory_space<vmem>>, vector<1x32x32xbf16>
    %54 = vector.shape_cast %53 : vector<1x32x32xbf16> to vector<32x32xbf16>
    %cst_21 = arith.constant dense<0.000000e+00> : vector<32x32xf32>
    %55 = tpu.matmul %52, %54, %cst_21 {dimension_numbers = #tpu.dot_dimension_numbers<[1], [0], [0], [1], [0, 0, 1, 1], [], []>} : vector<32x32xbf16>, vector<32x32xbf16>, vector<32x32xf32> -> vector<32x32xf32>
    %56 = arith.addf %46, %55 : vector<32x32xf32>
    %c2_22 = arith.constant 2 : index
    %c0_23 = arith.constant 0 : index
    %57 = vector.load %arg3[%c2_22, %c0_23] : memref<8x32xf32, #tpu.memory_space<vmem>>, vector<1x32xf32>
    %c5 = arith.constant 5 : index
    %c0_24 = arith.constant 0 : index
    %58 = vector.load %arg3[%c5, %c0_24] : memref<8x32xf32, #tpu.memory_space<vmem>>, vector<1x32xf32>
    %59 = vector.broadcast %57 : vector<1x32xf32> to vector<32x32xf32>
    %60 = arith.mulf %56, %59 : vector<32x32xf32>
    %61 = vector.broadcast %58 : vector<1x32xf32> to vector<32x32xf32>
    %62 = arith.addf %60, %61 : vector<32x32xf32>
    %cst_25 = arith.constant 0.000000e+00 : f32
    %63 = vector.broadcast %cst_25 : f32 to vector<32x32xf32>
    %64 = arith.maximumf %62, %63 : vector<32x32xf32>
    %65 = arith.truncf %64 : vector<32x32xf32> to vector<32x32xbf16>
    %c4 = arith.constant 4 : index
    %c0_26 = arith.constant 0 : index
    %c0_27 = arith.constant 0 : index
    %66 = vector.load %arg2[%c4, %c0_26, %c0_27] : memref<9x32x32xbf16, #tpu.memory_space<vmem>>, vector<1x32x32xbf16>
    %67 = vector.shape_cast %66 : vector<1x32x32xbf16> to vector<32x32xbf16>
    %cst_28 = arith.constant dense<0.000000e+00> : vector<32x32xf32>
    %68 = tpu.matmul %65, %67, %cst_28 {dimension_numbers = #tpu.dot_dimension_numbers<[1], [0], [0], [1], [0, 0, 1, 1], [], []>} : vector<32x32xbf16>, vector<32x32xbf16>, vector<32x32xf32> -> vector<32x32xf32>
    %c1_i32_29 = arith.constant 1 : i32
    %69 = tpu.dynamic_rotate %64 by %c1_i32_29 dim 0 : vector<32x32xf32>, i32 -> vector<32x32xf32>
    %cst_30 = arith.constant 0.000000e+00 : f32
    %70 = vector.shape_cast %30 : vector<32x1xi1> to vector<32x1xi1>
    %71 = vector.broadcast %70 : vector<32x1xi1> to vector<32x32xi1>
    %72 = vector.broadcast %cst_30 : f32 to vector<32x32xf32>
    %73 = arith.select %71, %72, %69 : vector<32x32xi1>, vector<32x32xf32>
    %74 = arith.truncf %73 : vector<32x32xf32> to vector<32x32xbf16>
    %c3 = arith.constant 3 : index
    %c0_31 = arith.constant 0 : index
    %c0_32 = arith.constant 0 : index
    %75 = vector.load %arg2[%c3, %c0_31, %c0_32] : memref<9x32x32xbf16, #tpu.memory_space<vmem>>, vector<1x32x32xbf16>
    %76 = vector.shape_cast %75 : vector<1x32x32xbf16> to vector<32x32xbf16>
    %cst_33 = arith.constant dense<0.000000e+00> : vector<32x32xf32>
    %77 = tpu.matmul %74, %76, %cst_33 {dimension_numbers = #tpu.dot_dimension_numbers<[1], [0], [0], [1], [0, 0, 1, 1], [], []>} : vector<32x32xbf16>, vector<32x32xbf16>, vector<32x32xf32> -> vector<32x32xf32>
    %78 = arith.addf %68, %77 : vector<32x32xf32>
    %c31_i32_34 = arith.constant 31 : i32
    %79 = tpu.dynamic_rotate %64 by %c31_i32_34 dim 0 : vector<32x32xf32>, i32 -> vector<32x32xf32>
    %cst_35 = arith.constant 0.000000e+00 : f32
    %80 = vector.shape_cast %32 : vector<32x1xi1> to vector<32x1xi1>
    %81 = vector.broadcast %80 : vector<32x1xi1> to vector<32x32xi1>
    %82 = vector.broadcast %cst_35 : f32 to vector<32x32xf32>
    %83 = arith.select %81, %82, %79 : vector<32x32xi1>, vector<32x32xf32>
    %84 = arith.truncf %83 : vector<32x32xf32> to vector<32x32xbf16>
    %c5_36 = arith.constant 5 : index
    %c0_37 = arith.constant 0 : index
    %c0_38 = arith.constant 0 : index
    %85 = vector.load %arg2[%c5_36, %c0_37, %c0_38] : memref<9x32x32xbf16, #tpu.memory_space<vmem>>, vector<1x32x32xbf16>
    %86 = vector.shape_cast %85 : vector<1x32x32xbf16> to vector<32x32xbf16>
    %cst_39 = arith.constant dense<0.000000e+00> : vector<32x32xf32>
    %87 = tpu.matmul %84, %86, %cst_39 {dimension_numbers = #tpu.dot_dimension_numbers<[1], [0], [0], [1], [0, 0, 1, 1], [], []>} : vector<32x32xbf16>, vector<32x32xbf16>, vector<32x32xf32> -> vector<32x32xf32>
    %88 = arith.addf %78, %87 : vector<32x32xf32>
    %c3_40 = arith.constant 3 : index
    %c0_41 = arith.constant 0 : index
    %89 = vector.load %arg3[%c3_40, %c0_41] : memref<8x32xf32, #tpu.memory_space<vmem>>, vector<1x32xf32>
    %c6 = arith.constant 6 : index
    %c0_42 = arith.constant 0 : index
    %90 = vector.load %arg3[%c6, %c0_42] : memref<8x32xf32, #tpu.memory_space<vmem>>, vector<1x32xf32>
    %91 = vector.broadcast %89 : vector<1x32xf32> to vector<32x32xf32>
    %92 = arith.mulf %88, %91 : vector<32x32xf32>
    %93 = vector.broadcast %90 : vector<1x32xf32> to vector<32x32xf32>
    %94 = arith.addf %92, %93 : vector<32x32xf32>
    %cst_43 = arith.constant 0.000000e+00 : f32
    %95 = vector.broadcast %cst_43 : f32 to vector<32x32xf32>
    %96 = arith.maximumf %94, %95 : vector<32x32xf32>
    %97 = arith.truncf %96 : vector<32x32xf32> to vector<32x32xbf16>
    %c7 = arith.constant 7 : index
    %c0_44 = arith.constant 0 : index
    %c0_45 = arith.constant 0 : index
    %98 = vector.load %arg2[%c7, %c0_44, %c0_45] : memref<9x32x32xbf16, #tpu.memory_space<vmem>>, vector<1x32x32xbf16>
    %99 = vector.shape_cast %98 : vector<1x32x32xbf16> to vector<32x32xbf16>
    %cst_46 = arith.constant dense<0.000000e+00> : vector<32x32xf32>
    %100 = tpu.matmul %97, %99, %cst_46 {dimension_numbers = #tpu.dot_dimension_numbers<[1], [0], [0], [1], [0, 0, 1, 1], [], []>} : vector<32x32xbf16>, vector<32x32xbf16>, vector<32x32xf32> -> vector<32x32xf32>
    %c1_i32_47 = arith.constant 1 : i32
    %101 = tpu.dynamic_rotate %96 by %c1_i32_47 dim 0 : vector<32x32xf32>, i32 -> vector<32x32xf32>
    %cst_48 = arith.constant 0.000000e+00 : f32
    %102 = vector.shape_cast %30 : vector<32x1xi1> to vector<32x1xi1>
    %103 = vector.broadcast %102 : vector<32x1xi1> to vector<32x32xi1>
    %104 = vector.broadcast %cst_48 : f32 to vector<32x32xf32>
    %105 = arith.select %103, %104, %101 : vector<32x32xi1>, vector<32x32xf32>
    %106 = arith.truncf %105 : vector<32x32xf32> to vector<32x32xbf16>
    %c6_49 = arith.constant 6 : index
    %c0_50 = arith.constant 0 : index
    %c0_51 = arith.constant 0 : index
    %107 = vector.load %arg2[%c6_49, %c0_50, %c0_51] : memref<9x32x32xbf16, #tpu.memory_space<vmem>>, vector<1x32x32xbf16>
    %108 = vector.shape_cast %107 : vector<1x32x32xbf16> to vector<32x32xbf16>
    %cst_52 = arith.constant dense<0.000000e+00> : vector<32x32xf32>
    %109 = tpu.matmul %106, %108, %cst_52 {dimension_numbers = #tpu.dot_dimension_numbers<[1], [0], [0], [1], [0, 0, 1, 1], [], []>} : vector<32x32xbf16>, vector<32x32xbf16>, vector<32x32xf32> -> vector<32x32xf32>
    %110 = arith.addf %100, %109 : vector<32x32xf32>
    %c31_i32_53 = arith.constant 31 : i32
    %111 = tpu.dynamic_rotate %96 by %c31_i32_53 dim 0 : vector<32x32xf32>, i32 -> vector<32x32xf32>
    %cst_54 = arith.constant 0.000000e+00 : f32
    %112 = vector.shape_cast %32 : vector<32x1xi1> to vector<32x1xi1>
    %113 = vector.broadcast %112 : vector<32x1xi1> to vector<32x32xi1>
    %114 = vector.broadcast %cst_54 : f32 to vector<32x32xf32>
    %115 = arith.select %113, %114, %111 : vector<32x32xi1>, vector<32x32xf32>
    %116 = arith.truncf %115 : vector<32x32xf32> to vector<32x32xbf16>
    %c8 = arith.constant 8 : index
    %c0_55 = arith.constant 0 : index
    %c0_56 = arith.constant 0 : index
    %117 = vector.load %arg2[%c8, %c0_55, %c0_56] : memref<9x32x32xbf16, #tpu.memory_space<vmem>>, vector<1x32x32xbf16>
    %118 = vector.shape_cast %117 : vector<1x32x32xbf16> to vector<32x32xbf16>
    %cst_57 = arith.constant dense<0.000000e+00> : vector<32x32xf32>
    %119 = tpu.matmul %116, %118, %cst_57 {dimension_numbers = #tpu.dot_dimension_numbers<[1], [0], [0], [1], [0, 0, 1, 1], [], []>} : vector<32x32xbf16>, vector<32x32xbf16>, vector<32x32xf32> -> vector<32x32xf32>
    %120 = arith.addf %110, %119 : vector<32x32xf32>
    %c4_58 = arith.constant 4 : index
    %c0_59 = arith.constant 0 : index
    %121 = vector.load %arg3[%c4_58, %c0_59] : memref<8x32xf32, #tpu.memory_space<vmem>>, vector<1x32xf32>
    %c7_60 = arith.constant 7 : index
    %c0_61 = arith.constant 0 : index
    %122 = vector.load %arg3[%c7_60, %c0_61] : memref<8x32xf32, #tpu.memory_space<vmem>>, vector<1x32xf32>
    %123 = vector.broadcast %121 : vector<1x32xf32> to vector<32x32xf32>
    %124 = arith.mulf %120, %123 : vector<32x32xf32>
    %125 = vector.broadcast %122 : vector<1x32xf32> to vector<32x32xf32>
    %126 = arith.addf %124, %125 : vector<32x32xf32>
    %cst_62 = arith.constant 0.000000e+00 : f32
    %127 = vector.broadcast %cst_62 : f32 to vector<32x32xf32>
    %128 = arith.maximumf %126, %127 : vector<32x32xf32>
    %129 = arith.truncf %128 : vector<32x32xf32> to vector<32x32xbf16>
    %c0_63 = arith.constant 0 : index
    %c0_64 = arith.constant 0 : index
    %130 = vector.load %arg4[%c0_63, %c0_64] : memref<32x32xbf16, #tpu.memory_space<vmem>>, vector<32x32xbf16>
    %cst_65 = arith.constant dense<0.000000e+00> : vector<32x32xf32>
    %131 = tpu.matmul %129, %130, %cst_65 {dimension_numbers = #tpu.dot_dimension_numbers<[1], [0], [0], [1], [0, 0, 1, 1], [], []>} : vector<32x32xbf16>, vector<32x32xbf16>, vector<32x32xf32> -> vector<32x32xf32>
    %c1_66 = arith.constant 1 : index
    %c0_67 = arith.constant 0 : index
    %132 = vector.load %arg3[%c1_66, %c0_67] : memref<8x32xf32, #tpu.memory_space<vmem>>, vector<1x32xf32>
    %133 = vector.broadcast %132 : vector<1x32xf32> to vector<32x32xf32>
    %134 = arith.addf %131, %133 : vector<32x32xf32>
    %c0_68 = arith.constant 0 : index
    %c0_69 = arith.constant 0 : index
    %135 = vector.load %arg5[%c0_68, %c0_69] : memref<32x32xf32, #tpu.memory_space<vmem>>, vector<32x32xf32>
    tpu.vector_store %arg5[%c0_68, %c0_69], %134 {strides = array<i32>} : memref<32x32xf32, #tpu.memory_space<vmem>>, vector<32x32xf32>,
    return
  }
}

</mosaic_0001>

<llo_original>
// kernel: tpu_custom_call.1
$region0: #{tpu_custom_call.1}
  #allocation0 [shape = 'u32[]', space=smem, size = 0x4, offset = 0x4, fixed_abs, tag = 'smem constant byte address 0x4 - core index']
  #allocation1 [shape = 'u32[144,128]{1,0:T(1,128)}', space=vmem, size = 0x12000, scoped, tag = 'internal scratch']
  %s0 = inlined_call_operand.vmem [shape: s32[32,1], index: 0, kind: input, shape index: {}]
  %s1 = inlined_call_operand.vmem [shape: bf16[64,32], index: 1, kind: input, shape index: {}]
  %s2 = inlined_call_operand.hbm [shape: bf16[9,32,32], index: 2, kind: input, shape index: {}]
  %s3 = inlined_call_operand.vmem [shape: f32[8,32], index: 3, kind: input, shape index: {}]
  %s4 = inlined_call_operand.vmem [shape: bf16[32,32], index: 4, kind: input, shape index: {}]
  %s5 = inlined_call_operand.hbm [shape: f32[32,32], index: 5, kind: output, shape index: {}]
  %s6 = sld [smem:[#allocation0]]
  $region34: #{tpu_custom_call.1} parent=0
    _
  %s8 = ssub.s32 1, %s6
  %s9 = scalar_select 0, %s8, %s6
  $region1: #{tpu_custom_call.1} parent=0
    #allocation2 [shape = 'u8[73728]{0}', space=vmem, size = 0x12000, scoped, tag = 'input window, operand 2, single buffered']
    #allocation3 [shape = 's32[1]{0}', space=sflag, size = 0x4, scoped, tag = 'scoped memory for tpu_custom_call.1']
    #allocation4 [shape = 's32[1]{0}', space=sflag, size = 0x4, scoped, tag = 'scoped memory for tpu_custom_call.1']
    #allocation5 [shape = 'u8[16384]{0}', space=vmem, size = 0x4000, scoped, tag = 'output window, operand 0, single buffered']
    %10 = vsyncpa [#allocation3], 0
    %11 = vsyncpa [#allocation4], 0
    // Predicated region
    $region2: #{tpu_custom_call.1} parent=1 // pred_check
      _
    $region3: #{tpu_custom_call.1} parent=1 // pred_check_branch
      %13 = sbr.rel (0) target = $region5
    $region4: #{tpu_custom_call.1} parent=1 // pred_region
      _
    $region5: #{tpu_custom_call.1} parent=1 // pred_fallthru
      _
    // Predicated region
    $region6: #{tpu_custom_call.1} parent=1 // pred_check
      _
    $region7: #{tpu_custom_call.1} parent=1 // pred_check_branch
      %15 = sbr.rel (0) target = $region9
    $region8: #{tpu_custom_call.1} parent=1 // pred_region
      _
    $region9: #{tpu_custom_call.1} parent=1 // pred_fallthru
      _
    // Predicated region
    $region10: #{tpu_custom_call.1} parent=1 // pred_check
      _
    $region11: #{tpu_custom_call.1} parent=1 // pred_check_branch
      %17 = sbr.rel (0) target = $region13
    $region12: #{tpu_custom_call.1} parent=1 // pred_region
      %s19 = ssub.s32 2304, 2304
      %20 = vsyncadd [#allocation3], %s19
      %s21 = sshll.u32 [#allocation2], 4
      %s22 = int_to_ptr.vmem [resolvable:$true] %s21
      %27 = dma.hbm_to_vmem [thread:$0]  %s2, 2304, %s22, [#allocation3], 64, 64, 4
    $region13: #{tpu_custom_call.1} parent=1 // pred_fallthru
      _
    // Predicated region
    $region14: #{tpu_custom_call.1} parent=1 // pred_check
      _
    $region15: #{tpu_custom_call.1} parent=1 // pred_check_branch
      %29 = sbr.rel (0) target = $region17
    $region16: #{tpu_custom_call.1} parent=1 // pred_region
      _
    $region17: #{tpu_custom_call.1} parent=1 // pred_fallthru
      _
    // Predicated region
    $region18: #{tpu_custom_call.1} parent=1 // pred_check
      _
    $region19: #{tpu_custom_call.1} parent=1 // pred_check_branch
      %31 = sbr.rel (0) target = $region21
    $region20: #{tpu_custom_call.1} parent=1 // pred_region
      _
    $region21: #{tpu_custom_call.1} parent=1 // pred_fallthru
      _
    // Predicated region
    $region22: #{tpu_custom_call.1} parent=1 // pred_check
      _
    $region23: #{tpu_custom_call.1} parent=1 // pred_check_branch
      %33 = sbr.rel (0) target = $region25
    $region24: #{tpu_custom_call.1} parent=1 // pred_region
      %34 = dma.done [#allocation3], 2304
    $region25: #{tpu_custom_call.1} parent=1 // pred_fallthru
      _
    %v36 = vld [vmem:[%s0] sm:$0xff]
    %v37 = vld [vmem:[%s0 + $0x8] sm:$0xff]
    %v38 = vld [vmem:[%s0 + $0x10] sm:$0xff]
    %v39 = vld [vmem:[%s0 + $0x18] sm:$0xff]
    %v40 = vlaneseq
    %v41 = vand.u32 %v40, 127
    %42 = vset.pattern.permute.xlu0 0
    %43 = vperm.xlu0 %42, %v36
    %v44 = vpop.permute.xlu0 %43
    %45 = vset.pattern.permute.xlu0 0
    %46 = vperm.xlu0 %45, %v37
    %v47 = vpop.permute.xlu0 %46
    %48 = vset.pattern.permute.xlu0 0
    %49 = vperm.xlu0 %48, %v38
    %v50 = vpop.permute.xlu0 %49
    %51 = vset.pattern.permute.xlu0 0
    %52 = vperm.xlu0 %51, %v39
    %v53 = vpop.permute.xlu0 %52
    %vm54 = vcmp.eq.s32.totalorder %v41, %v44
    %vm55 = vcmp.eq.s32.totalorder %v41, %v47
    %vm56 = vcmp.eq.s32.totalorder %v41, %v50
    %vm57 = vcmp.eq.s32.totalorder %v41, %v53
    %v58 = vsel %vm54, 1, 0
    %v59 = vsel %vm55, 1, 0
    %v60 = vsel %vm56, 1, 0
    %v61 = vsel %vm57, 1, 0
    %v62 = vcvt.s32.f32 %v58
    %v63 = vcvt.s32.f32 %v59
    %v64 = vcvt.s32.f32 %v60
    %v65 = vcvt.s32.f32 %v61
    %v66 = vpack.c.bf16 %v63, %v62
    %v67 = vpack.c.bf16 %v65, %v64
    %v68 = vld [vmem:[%s1] sm:$0xf]
    %v69 = vld [vmem:[%s1 + $0x4] sm:$0xf]
    %v70 = vld [vmem:[%s1 + $0x8] sm:$0xf]
    %v71 = vld [vmem:[%s1 + $0xc] sm:$0xf]
    %v72 = vld [vmem:[%s1 + $0x10] sm:$0xf]
    %v73 = vld [vmem:[%s1 + $0x14] sm:$0xf]
    %v74 = vld [vmem:[%s1 + $0x18] sm:$0xf]
    %v75 = vld [vmem:[%s1 + $0x1c] sm:$0xf]
    %v76 = vld [vmem:[%s3] sm:$0x1]
    %v77 = vlaneseq
    %v78 = vshrl.u32 %v77, 7
    %v79 = vsub.s32 0, %v78
    %v80 = vrot.slane %v76, %v79
    %v89 = vunpack.c.l.b16 %v68
    %v90 = vunpack.c.l.b16 %v69
    %v91 = vunpack.c.l.b16 %v70
    %v92 = vunpack.c.l.b16 %v71
    %v93 = vunpack.c.l.b16 %v72
    %v94 = vunpack.c.l.b16 %v73
    %v95 = vunpack.c.l.b16 %v74
    %v96 = vunpack.c.l.b16 %v75
    %v97 = vpack.c.b16 %v90, %v89
    %v98 = vpack.c.b16 %v92, %v91
    %v99 = vpack.c.b16 %v94, %v93
    %v100 = vpack.c.b16 %v96, %v95
    %vm105 = vcmask 523264
    %v107 = vsel %vm105, %v66, 0
    %v110 = vsel %vm105, %v67, 0
    %112 = vmatprep.subr.bf16.mxu0 0
    %113 = vmatpush1.bf16.msra.mxu0 0
    %114 = vmatprep.subr.bf16.mxu0 0
    %115 = vmatpush1.bf16.msra.mxu0 0
    %116 = vmatprep.subr.bf16.mxu0 0
    %117 = vmatpush1.bf16.msra.mxu0 0
    %118 = vmatprep.subr.bf16.mxu0 0
    %119 = vmatpush1.bf16.msra.mxu0 0
    %120 = vmatprep.subr.bf16.mxu0 0
    %121 = vmatpush1.bf16.msra.mxu0 %v100
    %122 = vmatprep.subr.bf16.mxu0 0
    %123 = vmatpush1.bf16.msra.mxu0 %v99
    %124 = vmatprep.subr.bf16.mxu0 0
    %125 = vmatpush1.bf16.msra.mxu0 %v98
    %126 = vmatprep.subr.bf16.mxu0 0
    %127 = vmatpush1.bf16.msra.mxu0 %v97
    %128 = vmatprep.subr.bf16.mxu0 0
    %129 = vmatpush2.bf16.msra.mxu0 0
    %130 = vmatprep.subr.bf16.mxu0 0
    %131 = vmatpush2.bf16.msra.mxu0 0
    %132 = vmatprep.subr.bf16.mxu0 0
    %133 = vmatpush2.bf16.msra.mxu0 0
    %134 = vmatprep.subr.bf16.mxu0 0
    %135 = vmatpush2.bf16.msra.mxu0 0
    %136 = vmatprep.subr.bf16.mxu0 0
    %137 = vmatpush2.bf16.msra.mxu0 0
    %138 = vmatprep.subr.bf16.mxu0 0
    %139 = vmatpush2.bf16.msra.mxu0 0
    %140 = vmatprep.subr.bf16.mxu0 0
    %141 = vmatpush2.bf16.msra.mxu0 0
    %142 = vmatprep.subr.bf16.mxu0 0
    %143 = vmatpush2.bf16.msra.mxu0 0
    %144 = vmatprep.mubr.bf16.mxu0 0
    %145 = vmatmul.mubr.bf16.gmra.mxu0 %v107
    %v146 = vpop.f32.mrf.mxu0
    %v147 = vadd.f32 %v80, %v146
    %v148 = vpop.f32.mrf.mxu0
    %v149 = vpop.f32.mrf.mxu0
    %v150 = vadd.f32 %v80, %v149
    %v151 = vpop.f32.mrf.mxu0
    %152 = vmatprep.mubr.bf16.mxu0 0
    %153 = vmatmul.mubr.bf16.gmra.mxu0 %v110
    %v154 = vpop.f32.mrf.mxu0
    %v155 = vadd.f32 %v80, %v154
    %v156 = vpop.f32.mrf.mxu0
    %v157 = vpop.f32.mrf.mxu0
    %v158 = vadd.f32 %v80, %v157
    %v159 = vpop.f32.mrf.mxu0
    %160 = vdwg.mxu0
    %v161 = vlaneseq
    %v162 = vshrl.u32 %v161, 7
    %v163 = vadd.s32 %v162, 8
    %v164 = vadd.s32 %v162, 16
    %v165 = vadd.s32 %v162, 24
    %vm166 = vcmp.lt.s32.totalorder %v162, 0
    %v167 = vsub.s32 0, %v162
    %v168 = vsel %vm166, %v167, %v162
    %v169 = vshrl.u32 %v168, 4
    %v170 = vand.u32 %v168, 15
    %v171 = vsub.s32 0, %v170
    %v172 = vsel %vm166, %v171, %v170
    %vm173 = vcmp.lt.s32.totalorder %v163, 0
    %v174 = vsub.s32 0, %v163
    %v175 = vsel %vm173, %v174, %v163
    %v176 = vshrl.u32 %v175, 4
    %v177 = vand.u32 %v175, 15
    %v178 = vsub.s32 0, %v177
    %v179 = vsel %vm173, %v178, %v177
    %vm180 = vcmp.lt.s32.totalorder %v164, 0
    %v181 = vsub.s32 0, %v164
    %v182 = vsel %vm180, %v181, %v164
    %v183 = vshrl.u32 %v182, 4
    %v184 = vand.u32 %v182, 15
    %v185 = vsub.s32 0, %v184
    %v186 = vsel %vm180, %v185, %v184
    %vm187 = vcmp.lt.s32.totalorder %v165, 0
    %v188 = vsub.s32 0, %v165
    %v189 = vsel %vm187, %v188, %v165
    %v190 = vshrl.u32 %v189, 4
    %v191 = vand.u32 %v189, 15
    %v192 = vsub.s32 0, %v191
    %v193 = vsel %vm187, %v192, %v191
    %vm194 = vcmp.ne.s32.totalorder %v172, 0
    %vm195 = vcmp.ne.s32.totalorder %v179, 0
    %vm196 = vcmp.ne.s32.totalorder %v186, 0
    %vm197 = vcmp.ne.s32.totalorder %v193, 0
    %vm198 = vcmp.lt.s32.totalorder %v172, 0
    %vm199 = vcmp.lt.s32.totalorder %v179, 0
    %vm200 = vcmp.lt.s32.totalorder %v186, 0
    %vm201 = vcmp.lt.s32.totalorder %v193, 0
    %vm202 = vmand %vm198, %vm194
    %vm203 = vmand %vm199, %vm195
    %vm204 = vmand %vm200, %vm196
    %vm205 = vmand %vm201, %vm197
    %v206 = vadd.s32 %v172, 16
    %v207 = vadd.s32 %v179, 16
    %v208 = vadd.s32 %v186, 16
    %v209 = vadd.s32 %v193, 16
    %v210 = vsel %vm202, %v206, %v172
    %v211 = vsel %vm203, %v207, %v179
    %v212 = vsel %vm204, %v208, %v186
    %v213 = vsel %vm205, %v209, %v193
    %vm214 = vcmp.lt.s32.totalorder %v210, 1
    %vm215 = vcmp.lt.s32.totalorder %v211, 1
    %vm216 = vcmp.lt.s32.totalorder %v212, 1
    %vm217 = vcmp.lt.s32.totalorder %v213, 1
    %vm218 = vcmp.ge.s32.totalorder %v210, 15
    %vm219 = vcmp.ge.s32.totalorder %v211, 15
    %vm220 = vcmp.ge.s32.totalorder %v212, 15
    %vm221 = vcmp.ge.s32.totalorder %v213, 15
    %v222 = vpack.c.bf16 %v150, %v147
    %v223 = vpack.c.bf16 %v158, %v155
    %s224 = scalar_lea.vmem [#allocation2], 16
    %v225 = vld [vmem:[%s224] sm:$0xf]
    %v226 = vld [vmem:[%s224 + $0x4] sm:$0xf]
    %v227 = vld [vmem:[%s224 + $0x8] sm:$0xf]
    %v228 = vld [vmem:[%s224 + $0xc] sm:$0xf]
    %v229 = vrot.slane %v147, 7
    %v230 = vrot.slane %v150, 7
    %v231 = vrot.slane %v155, 7
    %v232 = vrot.slane %v158, 7
    %vm233 = vcmp.lt.s32.totalorder %v162, 1
    %v234 = vsel %vm233, %v231, %v232
    %v235 = vsel %vm233, %v230, %v231
    %v236 = vsel %vm233, %v229, %v230
    %v237 = vsel %vm233, %v232, %v229
    %v238 = vsel %vm214, 1, 0
    %v239 = vsel %vm215, 1, 0
    %v240 = vsel %vm216, 1, 0
    %v241 = vsel %vm217, 1, 0
    %vm242 = vcmp.eq.s32.totalorder %v238, 1
    %vm243 = vcmp.eq.s32.totalorder %v239, 1
    %vm244 = vcmp.eq.s32.totalorder %v240, 1
    %vm245 = vcmp.eq.s32.totalorder %v241, 1
    %v246 = vsel %vm242, 0.0, %v237
    %v247 = vsel %vm243, 0.0, %v236
    %v248 = vsel %vm244, 0.0, %v235
    %v249 = vsel %vm245, 0.0, %v234
    %v250 = vpack.c.bf16 %v247, %v246
    %v251 = vpack.c.bf16 %v249, %v248
    %v252 = vld [vmem:[#allocation2] sm:$0xf]
    %v253 = vld [vmem:[#allocation2 + $0x4] sm:$0xf]
    %v254 = vld [vmem:[#allocation2 + $0x8] sm:$0xf]
    %v255 = vld [vmem:[#allocation2 + $0xc] sm:$0xf]
    %v260 = vunpack.c.l.b16 %v252
    %v261 = vunpack.c.l.b16 %v253
    %v262 = vunpack.c.l.b16 %v254
    %v263 = vunpack.c.l.b16 %v255
    %v264 = vpack.c.b16 %v261, %v260
    %v265 = vpack.c.b16 %v263, %v262
    %vm268 = vcmask 261120
    %v270 = vsel %vm268, %v250, 0
    %v273 = vsel %vm268, %v251, 0
    %275 = vmatprep.subr.bf16.mxu0 0
    %276 = vmatpush1.bf16.msra.mxu0 0
    %277 = vmatprep.subr.bf16.mxu0 0
    %278 = vmatpush1.bf16.msra.mxu0 0
    %279 = vmatprep.subr.bf16.mxu0 0
    %280 = vmatpush1.bf16.msra.mxu0 0
    %281 = vmatprep.subr.bf16.mxu0 0
    %282 = vmatpush1.bf16.msra.mxu0 0
    %283 = vmatprep.subr.bf16.mxu0 0
    %284 = vmatpush1.bf16.msra.mxu0 0
    %285 = vmatprep.subr.bf16.mxu0 0
    %286 = vmatpush1.bf16.msra.mxu0 0
    %287 = vmatprep.subr.bf16.mxu0 0
    %288 = vmatpush1.bf16.msra.mxu0 %v265
    %289 = vmatprep.subr.bf16.mxu0 0
    %290 = vmatpush1.bf16.msra.mxu0 %v264
    %291 = vmatprep.subr.bf16.mxu0 0
    %292 = vmatpush2.bf16.msra.mxu0 0
    %293 = vmatprep.subr.bf16.mxu0 0
    %294 = vmatpush2.bf16.msra.mxu0 0
    %295 = vmatprep.subr.bf16.mxu0 0
    %296 = vmatpush2.bf16.msra.mxu0 0
    %297 = vmatprep.subr.bf16.mxu0 0
    %298 = vmatpush2.bf16.msra.mxu0 0
    %299 = vmatprep.subr.bf16.mxu0 0
    %300 = vmatpush2.bf16.msra.mxu0 0
    %301 = vmatprep.subr.bf16.mxu0 0
    %302 = vmatpush2.bf16.msra.mxu0 0
    %303 = vmatprep.subr.bf16.mxu0 0
    %304 = vmatpush2.bf16.msra.mxu0 0
    %305 = vmatprep.subr.bf16.mxu0 0
    %306 = vmatpush2.bf16.msra.mxu0 0
    %307 = vmatprep.mubr.bf16.mxu0 0
    %308 = vmatmul.mubr.bf16.gmra.mxu0 %v270
    %v309 = vpop.f32.mrf.mxu0
    %v310 = vadd.f32 0.0, %v309
    %v311 = vpop.f32.mrf.mxu0
    %v312 = vpop.f32.mrf.mxu0
    %v313 = vadd.f32 0.0, %v312
    %v314 = vpop.f32.mrf.mxu0
    %315 = vmatprep.mubr.bf16.mxu0 0
    %316 = vmatmul.mubr.bf16.gmra.mxu0 %v273
    %v317 = vpop.f32.mrf.mxu0
    %v318 = vadd.f32 0.0, %v317
    %v319 = vpop.f32.mrf.mxu0
    %v320 = vpop.f32.mrf.mxu0
    %v321 = vadd.f32 0.0, %v320
    %v322 = vpop.f32.mrf.mxu0
    %323 = vdwg.mxu0
    %v328 = vunpack.c.l.b16 %v225
    %v329 = vunpack.c.l.b16 %v226
    %v330 = vunpack.c.l.b16 %v227
    %v331 = vunpack.c.l.b16 %v228
    %v332 = vpack.c.b16 %v329, %v328
    %v333 = vpack.c.b16 %v331, %v330
    %v337 = vsel %vm268, %v222, 0
    %v340 = vsel %vm268, %v223, 0
    %342 = vmatprep.subr.bf16.mxu0 0
    %343 = vmatpush1.bf16.msra.mxu0 0
    %344 = vmatprep.subr.bf16.mxu0 0
    %345 = vmatpush1.bf16.msra.mxu0 0
    %346 = vmatprep.subr.bf16.mxu0 0
    %347 = vmatpush1.bf16.msra.mxu0 0
    %348 = vmatprep.subr.bf16.mxu0 0
    %349 = vmatpush1.bf16.msra.mxu0 0
    %350 = vmatprep.subr.bf16.mxu0 0
    %351 = vmatpush1.bf16.msra.mxu0 0
    %352 = vmatprep.subr.bf16.mxu0 0
    %353 = vmatpush1.bf16.msra.mxu0 0
    %354 = vmatprep.subr.bf16.mxu0 0
    %355 = vmatpush1.bf16.msra.mxu0 %v333
    %356 = vmatprep.subr.bf16.mxu0 0
    %357 = vmatpush1.bf16.msra.mxu0 %v332
    %358 = vmatprep.subr.bf16.mxu0 0
    %359 = vmatpush2.bf16.msra.mxu0 0
    %360 = vmatprep.subr.bf16.mxu0 0
    %361 = vmatpush2.bf16.msra.mxu0 0
    %362 = vmatprep.subr.bf16.mxu0 0
    %363 = vmatpush2.bf16.msra.mxu0 0
    %364 = vmatprep.subr.bf16.mxu0 0
    %365 = vmatpush2.bf16.msra.mxu0 0
    %366 = vmatprep.subr.bf16.mxu0 0
    %367 = vmatpush2.bf16.msra.mxu0 0
    %368 = vmatprep.subr.bf16.mxu0 0
    %369 = vmatpush2.bf16.msra.mxu0 0
    %370 = vmatprep.subr.bf16.mxu0 0
    %371 = vmatpush2.bf16.msra.mxu0 0
    %372 = vmatprep.subr.bf16.mxu0 0
    %373 = vmatpush2.bf16.msra.mxu0 0
    %374 = vmatprep.mubr.bf16.mxu0 0
    %375 = vmatmul.mubr.bf16.gmra.mxu0 %v337
    %v376 = vpop.f32.mrf.mxu0
    %v377 = vadd.f32 %v310, %v376
    %v378 = vpop.f32.mrf.mxu0
    %v379 = vpop.f32.mrf.mxu0
    %v380 = vadd.f32 %v313, %v379
    %v381 = vpop.f32.mrf.mxu0
    %382 = vmatprep.mubr.bf16.mxu0 0
    %383 = vmatmul.mubr.bf16.gmra.mxu0 %v340
    %v384 = vpop.f32.mrf.mxu0
    %v385 = vadd.f32 %v318, %v384
    %v386 = vpop.f32.mrf.mxu0
    %v387 = vpop.f32.mrf.mxu0
    %v388 = vadd.f32 %v321, %v387
    %v389 = vpop.f32.mrf.mxu0
    %390 = vdwg.mxu0
    %v391 = vrot.slane %v147, 1
    %v392 = vrot.slane %v150, 1
    %v393 = vrot.slane %v155, 1
    %v394 = vrot.slane %v158, 1
    %vm395 = vcmp.lt.s32.totalorder %v162, 7
    %v396 = vsel %vm395, %v393, %v394
    %v397 = vsel %vm395, %v392, %v393
    %v398 = vsel %vm395, %v391, %v392
    %v399 = vsel %vm395, %v394, %v391
    %v400 = vsel %vm218, 1, 0
    %v401 = vsel %vm219, 1, 0
    %v402 = vsel %vm220, 1, 0
    %v403 = vsel %vm221, 1, 0
    %vm404 = vcmp.eq.s32.totalorder %v400, 1
    %vm405 = vcmp.eq.s32.totalorder %v401, 1
    %vm406 = vcmp.eq.s32.totalorder %v402, 1
    %vm407 = vcmp.eq.s32.totalorder %v403, 1
    %v408 = vsel %vm404, 0.0, %v398
    %v409 = vsel %vm405, 0.0, %v397
    %v410 = vsel %vm406, 0.0, %v396
    %v411 = vsel %vm407, 0.0, %v399
    %v412 = vpack.c.bf16 %v409, %v408
    %v413 = vpack.c.bf16 %v411, %v410
    %s414 = scalar_lea.vmem [#allocation2], 32
    %v415 = vld [vmem:[%s414] sm:$0xf]
    %v416 = vld [vmem:[%s414 + $0x4] sm:$0xf]
    %v417 = vld [vmem:[%s414 + $0x8] sm:$0xf]
    %v418 = vld [vmem:[%s414 + $0xc] sm:$0xf]
    %v423 = vunpack.c.l.b16 %v415
    %v424 = vunpack.c.l.b16 %v416
    %v425 = vunpack.c.l.b16 %v417
    %v426 = vunpack.c.l.b16 %v418
    %v427 = vpack.c.b16 %v424, %v423
    %v428 = vpack.c.b16 %v426, %v425
    %v432 = vsel %vm268, %v412, 0
    %v435 = vsel %vm268, %v413, 0
    %437 = vmatprep.subr.bf16.mxu0 0
    %438 = vmatpush1.bf16.msra.mxu0 0
    %439 = vmatprep.subr.bf16.mxu0 0
    %440 = vmatpush1.bf16.msra.mxu0 0
    %441 = vmatprep.subr.bf16.mxu0 0
    %442 = vmatpush1.bf16.msra.mxu0 0
    %443 = vmatprep.subr.bf16.mxu0 0
    %444 = vmatpush1.bf16.msra.mxu0 0
    %445 = vmatprep.subr.bf16.mxu0 0
    %446 = vmatpush1.bf16.msra.mxu0 0
    %447 = vmatprep.subr.bf16.mxu0 0
    %448 = vmatpush1.bf16.msra.mxu0 0
    %449 = vmatprep.subr.bf16.mxu0 0
    %450 = vmatpush1.bf16.msra.mxu0 %v428
    %451 = vmatprep.subr.bf16.mxu0 0
    %452 = vmatpush1.bf16.msra.mxu0 %v427
    %453 = vmatprep.subr.bf16.mxu0 0
    %454 = vmatpush2.bf16.msra.mxu0 0
    %455 = vmatprep.subr.bf16.mxu0 0
    %456 = vmatpush2.bf16.msra.mxu0 0
    %457 = vmatprep.subr.bf16.mxu0 0
    %458 = vmatpush2.bf16.msra.mxu0 0
    %459 = vmatprep.subr.bf16.mxu0 0
    %460 = vmatpush2.bf16.msra.mxu0 0
    %461 = vmatprep.subr.bf16.mxu0 0
    %462 = vmatpush2.bf16.msra.mxu0 0
    %463 = vmatprep.subr.bf16.mxu0 0
    %464 = vmatpush2.bf16.msra.mxu0 0
    %465 = vmatprep.subr.bf16.mxu0 0
    %466 = vmatpush2.bf16.msra.mxu0 0
    %467 = vmatprep.subr.bf16.mxu0 0
    %468 = vmatpush2.bf16.msra.mxu0 0
    %469 = vmatprep.mubr.bf16.mxu0 0
    %470 = vmatmul.mubr.bf16.gmra.mxu0 %v432
    %v471 = vpop.f32.mrf.mxu0
    %v472 = vadd.f32 0.0, %v471
    %v473 = vpop.f32.mrf.mxu0
    %v474 = vpop.f32.mrf.mxu0
    %v475 = vadd.f32 0.0, %v474
    %v476 = vpop.f32.mrf.mxu0
    %477 = vmatprep.mubr.bf16.mxu0 0
    %478 = vmatmul.mubr.bf16.gmra.mxu0 %v435
    %v479 = vpop.f32.mrf.mxu0
    %v480 = vadd.f32 0.0, %v479
    %v481 = vpop.f32.mrf.mxu0
    %v482 = vpop.f32.mrf.mxu0
    %v483 = vadd.f32 0.0, %v482
    %v484 = vpop.f32.mrf.mxu0
    %485 = vdwg.mxu0
    %v486 = vadd.f32 %v377, %v472
    %v487 = vadd.f32 %v380, %v475
    %v488 = vadd.f32 %v385, %v480
    %v489 = vadd.f32 %v388, %v483
    %v490 = vld [vmem:[%s3 + $0x2] sm:$0x1]
    %v491 = vld [vmem:[%s3 + $0x5] sm:$0x1]
    %v492 = vlaneseq
    %v493 = vshrl.u32 %v492, 7
    %v494 = vsub.s32 0, %v493
    %v495 = vrot.slane %v490, %v494
    %v496 = vmul.f32 %v486, %v495
    %v497 = vmul.f32 %v487, %v495
    %v498 = vmul.f32 %v488, %v495
    %v499 = vmul.f32 %v489, %v495
    %v500 = vlaneseq
    %v501 = vshrl.u32 %v500, 7
    %v502 = vsub.s32 0, %v501
    %v503 = vrot.slane %v491, %v502
    %v504 = vadd.f32 %v496, %v503
    %v505 = vadd.f32 %v497, %v503
    %v506 = vadd.f32 %v498, %v503
    %v507 = vadd.f32 %v499, %v503
    %v508 = vmax.f32 %v504, 0.0
    %v509 = vmax.f32 %v505, 0.0
    %v510 = vmax.f32 %v506, 0.0
    %v511 = vmax.f32 %v507, 0.0
    %v512 = vpack.c.bf16 %v509, %v508
    %v513 = vpack.c.bf16 %v511, %v510
    %s514 = scalar_lea.vmem [#allocation2], 64
    %v515 = vld [vmem:[%s514] sm:$0xf]
    %v516 = vld [vmem:[%s514 + $0x4] sm:$0xf]
    %v517 = vld [vmem:[%s514 + $0x8] sm:$0xf]
    %v518 = vld [vmem:[%s514 + $0xc] sm:$0xf]
    %v519 = vrot.slane %v508, 7
    %v520 = vrot.slane %v509, 7
    %v521 = vrot.slane %v510, 7
    %v522 = vrot.slane %v511, 7
    %v523 = vsel %vm233, %v521, %v522
    %v524 = vsel %vm233, %v520, %v521
    %v525 = vsel %vm233, %v519, %v520
    %v526 = vsel %vm233, %v522, %v519
    %v527 = vsel %vm242, 0.0, %v526
    %v528 = vsel %vm243, 0.0, %v525
    %v529 = vsel %vm244, 0.0, %v524
    %v530 = vsel %vm245, 0.0, %v523
    %v531 = vpack.c.bf16 %v528, %v527
    %v532 = vpack.c.bf16 %v530, %v529
    %s533 = scalar_lea.vmem [#allocation2], 48
    %v534 = vld [vmem:[%s533] sm:$0xf]
    %v535 = vld [vmem:[%s533 + $0x4] sm:$0xf]
    %v536 = vld [vmem:[%s533 + $0x8] sm:$0xf]
    %v537 = vld [vmem:[%s533 + $0xc] sm:$0xf]
    %v542 = vunpack.c.l.b16 %v534
    %v543 = vunpack.c.l.b16 %v535
    %v544 = vunpack.c.l.b16 %v536
    %v545 = vunpack.c.l.b16 %v537
    %v546 = vpack.c.b16 %v543, %v542
    %v547 = vpack.c.b16 %v545, %v544
    %v551 = vsel %vm268, %v531, 0
    %v554 = vsel %vm268, %v532, 0
    %556 = vmatprep.subr.bf16.mxu0 0
    %557 = vmatpush1.bf16.msra.mxu0 0
    %558 = vmatprep.subr.bf16.mxu0 0
    %559 = vmatpush1.bf16.msra.mxu0 0
    %560 = vmatprep.subr.bf16.mxu0 0
    %561 = vmatpush1.bf16.msra.mxu0 0
    %562 = vmatprep.subr.bf16.mxu0 0
    %563 = vmatpush1.bf16.msra.mxu0 0
    %564 = vmatprep.subr.bf16.mxu0 0
    %565 = vmatpush1.bf16.msra.mxu0 0
    %566 = vmatprep.subr.bf16.mxu0 0
    %567 = vmatpush1.bf16.msra.mxu0 0
    %568 = vmatprep.subr.bf16.mxu0 0
    %569 = vmatpush1.bf16.msra.mxu0 %v547
    %570 = vmatprep.subr.bf16.mxu0 0
    %571 = vmatpush1.bf16.msra.mxu0 %v546
    %572 = vmatprep.subr.bf16.mxu0 0
    %573 = vmatpush2.bf16.msra.mxu0 0
    %574 = vmatprep.subr.bf16.mxu0 0
    %575 = vmatpush2.bf16.msra.mxu0 0
    %576 = vmatprep.subr.bf16.mxu0 0
    %577 = vmatpush2.bf16.msra.mxu0 0
    %578 = vmatprep.subr.bf16.mxu0 0
    %579 = vmatpush2.bf16.msra.mxu0 0
    %580 = vmatprep.subr.bf16.mxu0 0
    %581 = vmatpush2.bf16.msra.mxu0 0
    %582 = vmatprep.subr.bf16.mxu0 0
    %583 = vmatpush2.bf16.msra.mxu0 0
    %584 = vmatprep.subr.bf16.mxu0 0
    %585 = vmatpush2.bf16.msra.mxu0 0
    %586 = vmatprep.subr.bf16.mxu0 0
    %587 = vmatpush2.bf16.msra.mxu0 0
    %588 = vmatprep.mubr.bf16.mxu0 0
    %589 = vmatmul.mubr.bf16.gmra.mxu0 %v551
    %v590 = vpop.f32.mrf.mxu0
    %v591 = vadd.f32 0.0, %v590
    %v592 = vpop.f32.mrf.mxu0
    %v593 = vpop.f32.mrf.mxu0
    %v594 = vadd.f32 0.0, %v593
    %v595 = vpop.f32.mrf.mxu0
    %596 = vmatprep.mubr.bf16.mxu0 0
    %597 = vmatmul.mubr.bf16.gmra.mxu0 %v554
    %v598 = vpop.f32.mrf.mxu0
    %v599 = vadd.f32 0.0, %v598
    %v600 = vpop.f32.mrf.mxu0
    %v601 = vpop.f32.mrf.mxu0
    %v602 = vadd.f32 0.0, %v601
    %v603 = vpop.f32.mrf.mxu0
    %604 = vdwg.mxu0
    %v609 = vunpack.c.l.b16 %v515
    %v610 = vunpack.c.l.b16 %v516
    %v611 = vunpack.c.l.b16 %v517
    %v612 = vunpack.c.l.b16 %v518
    %v613 = vpack.c.b16 %v610, %v609
    %v614 = vpack.c.b16 %v612, %v611
    %v618 = vsel %vm268, %v512, 0
    %v621 = vsel %vm268, %v513, 0
    %623 = vmatprep.subr.bf16.mxu0 0
    %624 = vmatpush1.bf16.msra.mxu0 0
    %625 = vmatprep.subr.bf16.mxu0 0
    %626 = vmatpush1.bf16.msra.mxu0 0
    %627 = vmatprep.subr.bf16.mxu0 0
    %628 = vmatpush1.bf16.msra.mxu0 0
    %629 = vmatprep.subr.bf16.mxu0 0
    %630 = vmatpush1.bf16.msra.mxu0 0
    %631 = vmatprep.subr.bf16.mxu0 0
    %632 = vmatpush1.bf16.msra.mxu0 0
    %633 = vmatprep.subr.bf16.mxu0 0
    %634 = vmatpush1.bf16.msra.mxu0 0
    %635 = vmatprep.subr.bf16.mxu0 0
    %636 = vmatpush1.bf16.msra.mxu0 %v614
    %637 = vmatprep.subr.bf16.mxu0 0
    %638 = vmatpush1.bf16.msra.mxu0 %v613
    %639 = vmatprep.subr.bf16.mxu0 0
    %640 = vmatpush2.bf16.msra.mxu0 0
    %641 = vmatprep.subr.bf16.mxu0 0
    %642 = vmatpush2.bf16.msra.mxu0 0
    %643 = vmatprep.subr.bf16.mxu0 0
    %644 = vmatpush2.bf16.msra.mxu0 0
    %645 = vmatprep.subr.bf16.mxu0 0
    %646 = vmatpush2.bf16.msra.mxu0 0
    %647 = vmatprep.subr.bf16.mxu0 0
    %648 = vmatpush2.bf16.msra.mxu0 0
    %649 = vmatprep.subr.bf16.mxu0 0
    %650 = vmatpush2.bf16.msra.mxu0 0
    %651 = vmatprep.subr.bf16.mxu0 0
    %652 = vmatpush2.bf16.msra.mxu0 0
    %653 = vmatprep.subr.bf16.mxu0 0
    %654 = vmatpush2.bf16.msra.mxu0 0
    %655 = vmatprep.mubr.bf16.mxu0 0
    %656 = vmatmul.mubr.bf16.gmra.mxu0 %v618
    %v657 = vpop.f32.mrf.mxu0
    %v658 = vadd.f32 %v591, %v657
    %v659 = vpop.f32.mrf.mxu0
    %v660 = vpop.f32.mrf.mxu0
    %v661 = vadd.f32 %v594, %v660
    %v662 = vpop.f32.mrf.mxu0
    %663 = vmatprep.mubr.bf16.mxu0 0
    %664 = vmatmul.mubr.bf16.gmra.mxu0 %v621
    %v665 = vpop.f32.mrf.mxu0
    %v666 = vadd.f32 %v599, %v665
    %v667 = vpop.f32.mrf.mxu0
    %v668 = vpop.f32.mrf.mxu0
    %v669 = vadd.f32 %v602, %v668
    %v670 = vpop.f32.mrf.mxu0
    %671 = vdwg.mxu0
    %v672 = vrot.slane %v508, 1
    %v673 = vrot.slane %v509, 1
    %v674 = vrot.slane %v510, 1
    %v675 = vrot.slane %v511, 1
    %v676 = vsel %vm395, %v674, %v675
    %v677 = vsel %vm395, %v673, %v674
    %v678 = vsel %vm395, %v672, %v673
    %v679 = vsel %vm395, %v675, %v672
    %v680 = vsel %vm404, 0.0, %v678
    %v681 = vsel %vm405, 0.0, %v677
    %v682 = vsel %vm406, 0.0, %v676
    %v683 = vsel %vm407, 0.0, %v679
    %v684 = vpack.c.bf16 %v681, %v680
    %v685 = vpack.c.bf16 %v683, %v682
    %s686 = scalar_lea.vmem [#allocation2], 80
    %v687 = vld [vmem:[%s686] sm:$0xf]
    %v688 = vld [vmem:[%s686 + $0x4] sm:$0xf]
    %v689 = vld [vmem:[%s686 + $0x8] sm:$0xf]
    %v690 = vld [vmem:[%s686 + $0xc] sm:$0xf]
    %v695 = vunpack.c.l.b16 %v687
    %v696 = vunpack.c.l.b16 %v688
    %v697 = vunpack.c.l.b16 %v689
    %v698 = vunpack.c.l.b16 %v690
    %v699 = vpack.c.b16 %v696, %v695
    %v700 = vpack.c.b16 %v698, %v697
    %v704 = vsel %vm268, %v684, 0
    %v707 = vsel %vm268, %v685, 0
    %709 = vmatprep.subr.bf16.mxu0 0
    %710 = vmatpush1.bf16.msra.mxu0 0
    %711 = vmatprep.subr.bf16.mxu0 0
    %712 = vmatpush1.bf16.msra.mxu0 0
    %713 = vmatprep.subr.bf16.mxu0 0
    %714 = vmatpush1.bf16.msra.mxu0 0
    %715 = vmatprep.subr.bf16.mxu0 0
    %716 = vmatpush1.bf16.msra.mxu0 0
    %717 = vmatprep.subr.bf16.mxu0 0
    %718 = vmatpush1.bf16.msra.mxu0 0
    %719 = vmatprep.subr.bf16.mxu0 0
    %720 = vmatpush1.bf16.msra.mxu0 0
    %721 = vmatprep.subr.bf16.mxu0 0
    %722 = vmatpush1.bf16.msra.mxu0 %v700
    %723 = vmatprep.subr.bf16.mxu0 0
    %724 = vmatpush1.bf16.msra.mxu0 %v699
    %725 = vmatprep.subr.bf16.mxu0 0
    %726 = vmatpush2.bf16.msra.mxu0 0
    %727 = vmatprep.subr.bf16.mxu0 0
    %728 = vmatpush2.bf16.msra.mxu0 0
    %729 = vmatprep.subr.bf16.mxu0 0
    %730 = vmatpush2.bf16.msra.mxu0 0
    %731 = vmatprep.subr.bf16.mxu0 0
    %732 = vmatpush2.bf16.msra.mxu0 0
    %733 = vmatprep.subr.bf16.mxu0 0
    %734 = vmatpush2.bf16.msra.mxu0 0
    %735 = vmatprep.subr.bf16.mxu0 0
    %736 = vmatpush2.bf16.msra.mxu0 0
    %737 = vmatprep.subr.bf16.mxu0 0
    %738 = vmatpush2.bf16.msra.mxu0 0
    %739 = vmatprep.subr.bf16.mxu0 0
    %740 = vmatpush2.bf16.msra.mxu0 0
    %741 = vmatprep.mubr.bf16.mxu0 0
    %742 = vmatmul.mubr.bf16.gmra.mxu0 %v704
    %v743 = vpop.f32.mrf.mxu0
    %v744 = vadd.f32 0.0, %v743
    %v745 = vpop.f32.mrf.mxu0
    %v746 = vpop.f32.mrf.mxu0
    %v747 = vadd.f32 0.0, %v746
    %v748 = vpop.f32.mrf.mxu0
    %749 = vmatprep.mubr.bf16.mxu0 0
    %750 = vmatmul.mubr.bf16.gmra.mxu0 %v707
    %v751 = vpop.f32.mrf.mxu0
    %v752 = vadd.f32 0.0, %v751
    %v753 = vpop.f32.mrf.mxu0
    %v754 = vpop.f32.mrf.mxu0
    %v755 = vadd.f32 0.0, %v754
    %v756 = vpop.f32.mrf.mxu0
    %757 = vdwg.mxu0
    %v758 = vadd.f32 %v658, %v744
    %v759 = vadd.f32 %v661, %v747
    %v760 = vadd.f32 %v666, %v752
    %v761 = vadd.f32 %v669, %v755
    %v762 = vld [vmem:[%s3 + $0x3] sm:$0x1]
    %v763 = vld [vmem:[%s3 + $0x6] sm:$0x1]
    %v764 = vlaneseq
    %v765 = vshrl.u32 %v764, 7
    %v766 = vsub.s32 0, %v765
    %v767 = vrot.slane %v762, %v766
    %v768 = vmul.f32 %v758, %v767
    %v769 = vmul.f32 %v759, %v767
    %v770 = vmul.f32 %v760, %v767
    %v771 = vmul.f32 %v761, %v767
    %v772 = vlaneseq
    %v773 = vshrl.u32 %v772, 7
    %v774 = vsub.s32 0, %v773
    %v775 = vrot.slane %v763, %v774
    %v776 = vadd.f32 %v768, %v775
    %v777 = vadd.f32 %v769, %v775
    %v778 = vadd.f32 %v770, %v775
    %v779 = vadd.f32 %v771, %v775
    %v780 = vmax.f32 %v776, 0.0
    %v781 = vmax.f32 %v777, 0.0
    %v782 = vmax.f32 %v778, 0.0
    %v783 = vmax.f32 %v779, 0.0
    %v784 = vpack.c.bf16 %v781, %v780
    %v785 = vpack.c.bf16 %v783, %v782
    %s786 = scalar_lea.vmem [#allocation2], 112
    %v787 = vld [vmem:[%s786] sm:$0xf]
    %v788 = vld [vmem:[%s786 + $0x4] sm:$0xf]
    %v789 = vld [vmem:[%s786 + $0x8] sm:$0xf]
    %v790 = vld [vmem:[%s786 + $0xc] sm:$0xf]
    %v791 = vrot.slane %v780, 7
    %v792 = vrot.slane %v781, 7
    %v793 = vrot.slane %v782, 7
    %v794 = vrot.slane %v783, 7
    %v795 = vsel %vm233, %v793, %v794
    %v796 = vsel %vm233, %v792, %v793
    %v797 = vsel %vm233, %v791, %v792
    %v798 = vsel %vm233, %v794, %v791
    %v799 = vsel %vm242, 0.0, %v798
    %v800 = vsel %vm243, 0.0, %v797
    %v801 = vsel %vm244, 0.0, %v796
    %v802 = vsel %vm245, 0.0, %v795
    %v803 = vpack.c.bf16 %v800, %v799
    %v804 = vpack.c.bf16 %v802, %v801
    %s805 = scalar_lea.vmem [#allocation2], 96
    %v806 = vld [vmem:[%s805] sm:$0xf]
    %v807 = vld [vmem:[%s805 + $0x4] sm:$0xf]
    %v808 = vld [vmem:[%s805 + $0x8] sm:$0xf]
    %v809 = vld [vmem:[%s805 + $0xc] sm:$0xf]
    %v814 = vunpack.c.l.b16 %v806
    %v815 = vunpack.c.l.b16 %v807
    %v816 = vunpack.c.l.b16 %v808
    %v817 = vunpack.c.l.b16 %v809
    %v818 = vpack.c.b16 %v815, %v814
    %v819 = vpack.c.b16 %v817, %v816
    %v823 = vsel %vm268, %v803, 0
    %v826 = vsel %vm268, %v804, 0
    %828 = vmatprep.subr.bf16.mxu0 0
    %829 = vmatpush1.bf16.msra.mxu0 0
    %830 = vmatprep.subr.bf16.mxu0 0
    %831 = vmatpush1.bf16.msra.mxu0 0
    %832 = vmatprep.subr.bf16.mxu0 0
    %833 = vmatpush1.bf16.msra.mxu0 0
    %834 = vmatprep.subr.bf16.mxu0 0
    %835 = vmatpush1.bf16.msra.mxu0 0
    %836 = vmatprep.subr.bf16.mxu0 0
    %837 = vmatpush1.bf16.msra.mxu0 0
    %838 = vmatprep.subr.bf16.mxu0 0
    %839 = vmatpush1.bf16.msra.mxu0 0
    %840 = vmatprep.subr.bf16.mxu0 0
    %841 = vmatpush1.bf16.msra.mxu0 %v819
    %842 = vmatprep.subr.bf16.mxu0 0
    %843 = vmatpush1.bf16.msra.mxu0 %v818
    %844 = vmatprep.subr.bf16.mxu0 0
    %845 = vmatpush2.bf16.msra.mxu0 0
    %846 = vmatprep.subr.bf16.mxu0 0
    %847 = vmatpush2.bf16.msra.mxu0 0
    %848 = vmatprep.subr.bf16.mxu0 0
    %849 = vmatpush2.bf16.msra.mxu0 0
    %850 = vmatprep.subr.bf16.mxu0 0
    %851 = vmatpush2.bf16.msra.mxu0 0
    %852 = vmatprep.subr.bf16.mxu0 0
    %853 = vmatpush2.bf16.msra.mxu0 0
    %854 = vmatprep.subr.bf16.mxu0 0
    %855 = vmatpush2.bf16.msra.mxu0 0
    %856 = vmatprep.subr.bf16.mxu0 0
    %857 = vmatpush2.bf16.msra.mxu0 0
    %858 = vmatprep.subr.bf16.mxu0 0
    %859 = vmatpush2.bf16.msra.mxu0 0
    %860 = vmatprep.mubr.bf16.mxu0 0
    %861 = vmatmul.mubr.bf16.gmra.mxu0 %v823
    %v862 = vpop.f32.mrf.mxu0
    %v863 = vadd.f32 0.0, %v862
    %v864 = vpop.f32.mrf.mxu0
    %v865 = vpop.f32.mrf.mxu0
    %v866 = vadd.f32 0.0, %v865
    %v867 = vpop.f32.mrf.mxu0
    %868 = vmatprep.mubr.bf16.mxu0 0
    %869 = vmatmul.mubr.bf16.gmra.mxu0 %v826
    %v870 = vpop.f32.mrf.mxu0
    %v871 = vadd.f32 0.0, %v870
    %v872 = vpop.f32.mrf.mxu0
    %v873 = vpop.f32.mrf.mxu0
    %v874 = vadd.f32 0.0, %v873
    %v875 = vpop.f32.mrf.mxu0
    %876 = vdwg.mxu0
    %v881 = vunpack.c.l.b16 %v787
    %v882 = vunpack.c.l.b16 %v788
    %v883 = vunpack.c.l.b16 %v789
    %v884 = vunpack.c.l.b16 %v790
    %v885 = vpack.c.b16 %v882, %v881
    %v886 = vpack.c.b16 %v884, %v883
    %v890 = vsel %vm268, %v784, 0
    %v893 = vsel %vm268, %v785, 0
    %895 = vmatprep.subr.bf16.mxu0 0
    %896 = vmatpush1.bf16.msra.mxu0 0
    %897 = vmatprep.subr.bf16.mxu0 0
    %898 = vmatpush1.bf16.msra.mxu0 0
    %899 = vmatprep.subr.bf16.mxu0 0
    %900 = vmatpush1.bf16.msra.mxu0 0
    %901 = vmatprep.subr.bf16.mxu0 0
    %902 = vmatpush1.bf16.msra.mxu0 0
    %903 = vmatprep.subr.bf16.mxu0 0
    %904 = vmatpush1.bf16.msra.mxu0 0
    %905 = vmatprep.subr.bf16.mxu0 0
    %906 = vmatpush1.bf16.msra.mxu0 0
    %907 = vmatprep.subr.bf16.mxu0 0
    %908 = vmatpush1.bf16.msra.mxu0 %v886
    %909 = vmatprep.subr.bf16.mxu0 0
    %910 = vmatpush1.bf16.msra.mxu0 %v885
    %911 = vmatprep.subr.bf16.mxu0 0
    %912 = vmatpush2.bf16.msra.mxu0 0
    %913 = vmatprep.subr.bf16.mxu0 0
    %914 = vmatpush2.bf16.msra.mxu0 0
    %915 = vmatprep.subr.bf16.mxu0 0
    %916 = vmatpush2.bf16.msra.mxu0 0
    %917 = vmatprep.subr.bf16.mxu0 0
    %918 = vmatpush2.bf16.msra.mxu0 0
    %919 = vmatprep.subr.bf16.mxu0 0
    %920 = vmatpush2.bf16.msra.mxu0 0
    %921 = vmatprep.subr.bf16.mxu0 0
    %922 = vmatpush2.bf16.msra.mxu0 0
    %923 = vmatprep.subr.bf16.mxu0 0
    %924 = vmatpush2.bf16.msra.mxu0 0
    %925 = vmatprep.subr.bf16.mxu0 0
    %926 = vmatpush2.bf16.msra.mxu0 0
    %927 = vmatprep.mubr.bf16.mxu0 0
    %928 = vmatmul.mubr.bf16.gmra.mxu0 %v890
    %v929 = vpop.f32.mrf.mxu0
    %v930 = vadd.f32 %v863, %v929
    %v931 = vpop.f32.mrf.mxu0
    %v932 = vpop.f32.mrf.mxu0
    %v933 = vadd.f32 %v866, %v932
    %v934 = vpop.f32.mrf.mxu0
    %935 = vmatprep.mubr.bf16.mxu0 0
    %936 = vmatmul.mubr.bf16.gmra.mxu0 %v893
    %v937 = vpop.f32.mrf.mxu0
    %v938 = vadd.f32 %v871, %v937
    %v939 = vpop.f32.mrf.mxu0
    %v940 = vpop.f32.mrf.mxu0
    %v941 = vadd.f32 %v874, %v940
    %v942 = vpop.f32.mrf.mxu0
    %943 = vdwg.mxu0
    %v944 = vrot.slane %v780, 1
    %v945 = vrot.slane %v781, 1
    %v946 = vrot.slane %v782, 1
    %v947 = vrot.slane %v783, 1
    %v948 = vsel %vm395, %v946, %v947
    %v949 = vsel %vm395, %v945, %v946
    %v950 = vsel %vm395, %v944, %v945
    %v951 = vsel %vm395, %v947, %v944
    %v952 = vsel %vm404, 0.0, %v950
    %v953 = vsel %vm405, 0.0, %v949
    %v954 = vsel %vm406, 0.0, %v948
    %v955 = vsel %vm407, 0.0, %v951
    %v956 = vpack.c.bf16 %v953, %v952
    %v957 = vpack.c.bf16 %v955, %v954
    %s958 = scalar_lea.vmem [#allocation2], 128
    %v959 = vld [vmem:[%s958] sm:$0xf]
    %v960 = vld [vmem:[%s958 + $0x4] sm:$0xf]
    %v961 = vld [vmem:[%s958 + $0x8] sm:$0xf]
    %v962 = vld [vmem:[%s958 + $0xc] sm:$0xf]
    %v967 = vunpack.c.l.b16 %v959
    %v968 = vunpack.c.l.b16 %v960
    %v969 = vunpack.c.l.b16 %v961
    %v970 = vunpack.c.l.b16 %v962
    %v971 = vpack.c.b16 %v968, %v967
    %v972 = vpack.c.b16 %v970, %v969
    %v976 = vsel %vm268, %v956, 0
    %v979 = vsel %vm268, %v957, 0
    %981 = vmatprep.subr.bf16.mxu0 0
    %982 = vmatpush1.bf16.msra.mxu0 0
    %983 = vmatprep.subr.bf16.mxu0 0
    %984 = vmatpush1.bf16.msra.mxu0 0
    %985 = vmatprep.subr.bf16.mxu0 0
    %986 = vmatpush1.bf16.msra.mxu0 0
    %987 = vmatprep.subr.bf16.mxu0 0
    %988 = vmatpush1.bf16.msra.mxu0 0
    %989 = vmatprep.subr.bf16.mxu0 0
    %990 = vmatpush1.bf16.msra.mxu0 0
    %991 = vmatprep.subr.bf16.mxu0 0
    %992 = vmatpush1.bf16.msra.mxu0 0
    %993 = vmatprep.subr.bf16.mxu0 0
    %994 = vmatpush1.bf16.msra.mxu0 %v972
    %995 = vmatprep.subr.bf16.mxu0 0
    %996 = vmatpush1.bf16.msra.mxu0 %v971
    %997 = vmatprep.subr.bf16.mxu0 0
    %998 = vmatpush2.bf16.msra.mxu0 0
    %999 = vmatprep.subr.bf16.mxu0 0
    %1000 = vmatpush2.bf16.msra.mxu0 0
    %1001 = vmatprep.subr.bf16.mxu0 0
    %1002 = vmatpush2.bf16.msra.mxu0 0
    %1003 = vmatprep.subr.bf16.mxu0 0
    %1004 = vmatpush2.bf16.msra.mxu0 0
    %1005 = vmatprep.subr.bf16.mxu0 0
    %1006 = vmatpush2.bf16.msra.mxu0 0
    %1007 = vmatprep.subr.bf16.mxu0 0
    %1008 = vmatpush2.bf16.msra.mxu0 0
    %1009 = vmatprep.subr.bf16.mxu0 0
    %1010 = vmatpush2.bf16.msra.mxu0 0
    %1011 = vmatprep.subr.bf16.mxu0 0
    %1012 = vmatpush2.bf16.msra.mxu0 0
    %1013 = vmatprep.mubr.bf16.mxu0 0
    %1014 = vmatmul.mubr.bf16.gmra.mxu0 %v976
    %v1015 = vpop.f32.mrf.mxu0
    %v1016 = vadd.f32 0.0, %v1015
    %v1017 = vpop.f32.mrf.mxu0
    %v1018 = vpop.f32.mrf.mxu0
    %v1019 = vadd.f32 0.0, %v1018
    %v1020 = vpop.f32.mrf.mxu0
    %1021 = vmatprep.mubr.bf16.mxu0 0
    %1022 = vmatmul.mubr.bf16.gmra.mxu0 %v979
    %v1023 = vpop.f32.mrf.mxu0
    %v1024 = vadd.f32 0.0, %v1023
    %v1025 = vpop.f32.mrf.mxu0
    %v1026 = vpop.f32.mrf.mxu0
    %v1027 = vadd.f32 0.0, %v1026
    %v1028 = vpop.f32.mrf.mxu0
    %1029 = vdwg.mxu0
    %v1030 = vadd.f32 %v930, %v1016
    %v1031 = vadd.f32 %v933, %v1019
    %v1032 = vadd.f32 %v938, %v1024
    %v1033 = vadd.f32 %v941, %v1027
    %v1034 = vld [vmem:[%s3 + $0x4] sm:$0x1]
    %v1035 = vld [vmem:[%s3 + $0x7] sm:$0x1]
    %v1036 = vlaneseq
    %v1037 = vshrl.u32 %v1036, 7
    %v1038 = vsub.s32 0, %v1037
    %v1039 = vrot.slane %v1034, %v1038
    %v1040 = vmul.f32 %v1030, %v1039
    %v1041 = vmul.f32 %v1031, %v1039
    %v1042 = vmul.f32 %v1032, %v1039
    %v1043 = vmul.f32 %v1033, %v1039
    %v1044 = vlaneseq
    %v1045 = vshrl.u32 %v1044, 7
    %v1046 = vsub.s32 0, %v1045
    %v1047 = vrot.slane %v1035, %v1046
    %v1048 = vadd.f32 %v1040, %v1047
    %v1049 = vadd.f32 %v1041, %v1047
    %v1050 = vadd.f32 %v1042, %v1047
    %v1051 = vadd.f32 %v1043, %v1047
    %v1052 = vmax.f32 %v1048, 0.0
    %v1053 = vmax.f32 %v1049, 0.0
    %v1054 = vmax.f32 %v1050, 0.0
    %v1055 = vmax.f32 %v1051, 0.0
    %v1056 = vpack.c.bf16 %v1053, %v1052
    %v1057 = vpack.c.bf16 %v1055, %v1054
    %v1058 = vld [vmem:[%s4] sm:$0xf]
    %v1059 = vld [vmem:[%s4 + $0x4] sm:$0xf]
    %v1060 = vld [vmem:[%s4 + $0x8] sm:$0xf]
    %v1061 = vld [vmem:[%s4 + $0xc] sm:$0xf]
    %v1062 = vld [vmem:[%s3 + $0x1] sm:$0x1]
    %v1063 = vlaneseq
    %v1064 = vshrl.u32 %v1063, 7
    %v1065 = vsub.s32 0, %v1064
    %v1066 = vrot.slane %v1062, %v1065
    %v1071 = vunpack.c.l.b16 %v1058
    %v1072 = vunpack.c.l.b16 %v1059
    %v1073 = vunpack.c.l.b16 %v1060
    %v1074 = vunpack.c.l.b16 %v1061
    %v1075 = vpack.c.b16 %v1072, %v1071
    %v1076 = vpack.c.b16 %v1074, %v1073
    %v1080 = vsel %vm268, %v1056, 0
    %v1083 = vsel %vm268, %v1057, 0
    %1085 = vmatprep.subr.bf16.mxu0 0
    %1086 = vmatpush1.bf16.msra.mxu0 0
    %1087 = vmatprep.subr.bf16.mxu0 0
    %1088 = vmatpush1.bf16.msra.mxu0 0
    %1089 = vmatprep.subr.bf16.mxu0 0
    %1090 = vmatpush1.bf16.msra.mxu0 0
    %1091 = vmatprep.subr.bf16.mxu0 0
    %1092 = vmatpush1.bf16.msra.mxu0 0
    %1093 = vmatprep.subr.bf16.mxu0 0
    %1094 = vmatpush1.bf16.msra.mxu0 0
    %1095 = vmatprep.subr.bf16.mxu0 0
    %1096 = vmatpush1.bf16.msra.mxu0 0
    %1097 = vmatprep.subr.bf16.mxu0 0
    %1098 = vmatpush1.bf16.msra.mxu0 %v1076
    %1099 = vmatprep.subr.bf16.mxu0 0
    %1100 = vmatpush1.bf16.msra.mxu0 %v1075
    %1101 = vmatprep.subr.bf16.mxu0 0
    %1102 = vmatpush2.bf16.msra.mxu0 0
    %1103 = vmatprep.subr.bf16.mxu0 0
    %1104 = vmatpush2.bf16.msra.mxu0 0
    %1105 = vmatprep.subr.bf16.mxu0 0
    %1106 = vmatpush2.bf16.msra.mxu0 0
    %1107 = vmatprep.subr.bf16.mxu0 0
    %1108 = vmatpush2.bf16.msra.mxu0 0
    %1109 = vmatprep.subr.bf16.mxu0 0
    %1110 = vmatpush2.bf16.msra.mxu0 0
    %1111 = vmatprep.subr.bf16.mxu0 0
    %1112 = vmatpush2.bf16.msra.mxu0 0
    %1113 = vmatprep.subr.bf16.mxu0 0
    %1114 = vmatpush2.bf16.msra.mxu0 0
    %1115 = vmatprep.subr.bf16.mxu0 0
    %1116 = vmatpush2.bf16.msra.mxu0 0
    %1117 = vmatprep.mubr.bf16.mxu0 0
    %1118 = vmatmul.mubr.bf16.gmra.mxu0 %v1080
    %v1119 = vpop.f32.mrf.mxu0
    %v1120 = vadd.f32 %v1066, %v1119
    %v1121 = vpop.f32.mrf.mxu0
    %v1122 = vpop.f32.mrf.mxu0
    %v1123 = vadd.f32 %v1066, %v1122
    %v1124 = vpop.f32.mrf.mxu0
    %1125 = vmatprep.mubr.bf16.mxu0 0
    %1126 = vmatmul.mubr.bf16.gmra.mxu0 %v1083
    %v1127 = vpop.f32.mrf.mxu0
    %v1128 = vadd.f32 %v1066, %v1127
    %v1129 = vpop.f32.mrf.mxu0
    %v1130 = vpop.f32.mrf.mxu0
    %v1131 = vadd.f32 %v1066, %v1130
    %v1132 = vpop.f32.mrf.mxu0
    %1133 = vdwg.mxu0
    %1134 = vst.msk [vmem:[#allocation5] sm:$0xff] %vm268, %v1120
    %1135 = vst.msk [vmem:[#allocation5 + $0x8] sm:$0xff] %vm268, %v1123
    %1136 = vst.msk [vmem:[#allocation5 + $0x10] sm:$0xff] %vm268, %v1128
    %1137 = vst.msk [vmem:[#allocation5 + $0x18] sm:$0xff] %vm268, %v1131
    // Predicated region
    $region26: #{tpu_custom_call.1} parent=1 // pred_check
      _
    $region27: #{tpu_custom_call.1} parent=1 // pred_check_branch
      %1139 = sbr.rel (0) target = $region29
    $region28: #{tpu_custom_call.1} parent=1 // pred_region
      %s1141 = ssub.s32 512, 512
      %1142 = vsyncadd [#allocation4], %s1141
      %s1143 = sshll.u32 [#allocation5], 4
      %s1144 = int_to_ptr.vmem [resolvable:$true] %s1143
      %1149 = dma.vmem_to_hbm [thread:$0]  %s1144, 512, %s5, [#allocation4], 128, 128, 8
    $region29: #{tpu_custom_call.1} parent=1 // pred_fallthru
      _
    // Predicated region
    $region30: #{tpu_custom_call.1} parent=1 // pred_check
      _
    $region31: #{tpu_custom_call.1} parent=1 // pred_check_branch
      %1151 = sbr.rel (0) target = $region33
    $region32: #{tpu_custom_call.1} parent=1 // pred_region
      %1152 = dma.done [#allocation4], 512
    $region33: #{tpu_custom_call.1} parent=1 // pred_fallthru
      _
    %1153 = vsyncpa [#allocation3], 1
    %1154 = vsyncpa [#allocation4], 1

</llo_original>
